<compile_context>
chip_gen: v5e
topology: v5e:2x2
jax: 0.10.0
libtpu: 0.0.40
codegen_flags: <defaults>
</compile_context>

<pallas_src>
import functools

import jax
import jax.numpy as jnp
from jax.experimental import pallas as pl
from jax.experimental.pallas import tpu as pltpu


def _round_up(n, m):
    return ((n + m - 1) // m) * m


def _dqn_mlp_kernel(x_ref, w1_ref, b1_ref, w2_ref, b2_ref, w3_ref, b3_ref, o_ref):
    """One batch tile of the 3-layer MLP, fully fused in VMEM.

    x:  (TB, S)   bf16
    w1: (S, H)    bf16      b1: (1, H)   f32
    w2: (H, H)    bf16      b2: (1, H)   f32
    w3: (H, Ap)   bf16      b3: (1, Ap)  f32   (Ap = action dim padded to 128 lanes)
    o:  (TB, Ap)  bf16  (f32 accumulation in-kernel, bf16 writeback)
    """
    x = x_ref[...]

    # Layer 1: Linear + ReLU (MXU, f32 accumulation; activation stored bf16).
    h1 = jnp.dot(x, w1_ref[...], preferred_element_type=jnp.float32) + b1_ref[...]
    h1 = jnp.maximum(h1, 0.0).astype(w2_ref.dtype)

    # Layer 2: Linear + ReLU.
    h2 = jnp.dot(h1, w2_ref[...], preferred_element_type=jnp.float32) + b2_ref[...]
    h2 = jnp.maximum(h2, 0.0).astype(w3_ref.dtype)

    # Layer 3: Linear (Q-values, no activation).
    q = jnp.dot(h2, w3_ref[...], preferred_element_type=jnp.float32) + b3_ref[...]

    o_ref[...] = q.astype(o_ref.dtype)


def prepare_params(w1, b1, w2, b2, w3, b3, use_bf16=True):
    """One-time parameter prep (hoisted out of the per-call path).

    Pads w3/b3 out to a 128-lane multiple and casts weights to bf16 (biases stay
    f32).  Returns (prepared_params, action_dim).
    """
    A = w3.shape[1]
    Ap = _round_up(A, 128)
    if Ap != A:
        w3 = jnp.pad(w3, ((0, 0), (0, Ap - A)))
        b3 = jnp.pad(b3, ((0, 0), (0, Ap - A)))
    wdt = jnp.bfloat16 if use_bf16 else jnp.float32
    params = (
        w1.astype(wdt), b1.astype(jnp.float32),
        w2.astype(wdt), b2.astype(jnp.float32),
        w3.astype(wdt), b3.astype(jnp.float32),
    )
    return jax.tree_util.tree_map(jnp.asarray, params), A


@functools.partial(jax.jit, static_argnames=("action_dim", "block_b"))
def dqn_forward(x, params, *, action_dim, block_b=1024):
    """Pallas wrapper: batch-tiled grid, resident single-buffered weights."""
    w1, b1, w2, b2, w3, b3 = params
    B, S = x.shape
    H = w1.shape[1]
    Ap = w3.shape[1]          # already lane-padded by prepare_params
    out_dtype = jnp.bfloat16  # f32 accumulation in-kernel, bf16 writeback

    # Per-call input prep: cast to the MXU operand dtype.
    x = x.astype(w1.dtype)

    # Batch tiling: tile multiple of 8 (sublane); ensure >= 2 grid steps when the
    # batch allows it so v7x's second TensorCore gets work ("parallel" axis).
    Bp8 = _round_up(B, 8)
    TB = min(block_b, Bp8)
    if Bp8 >= 16:
        TB = min(TB, _round_up((Bp8 + 1) // 2, 8))
    TB = _round_up(max(TB, 8), 8)
    Bp = _round_up(B, TB)
    if Bp != B:
        x = jnp.pad(x, ((0, Bp - B), (0, 0)))

    grid = (Bp // TB,)

    # Explicit VMEM budget: single-buffered weights + double-buffered x / out tiles
    # + headroom for the (TB, H) intermediates.  Capped at 48 MiB for v7x (64 MiB
    # physical); v5e/v6e have 128 MiB physical so the cap is always safe.
    weight_bytes = sum(int(t.size) * t.dtype.itemsize
                       for t in (w1, b1, w2, b2, w3, b3))
    vmem_budget = (
        weight_bytes
        + 2 * TB * S * x.dtype.itemsize
        + 2 * TB * Ap * jnp.dtype(out_dtype).itemsize
        + 4 * TB * H * 4
    )
    vmem_limit = int(min(48 << 20, max(vmem_budget + (2 << 20), 16 << 20)))

    flops = 2 * Bp * (S * H + H * H + H * Ap)
    bytes_accessed = (int(x.size) * x.dtype.itemsize + weight_bytes
                      + Bp * Ap * jnp.dtype(out_dtype).itemsize)

    # Resident (never re-DMA'd) weights/biases: constant index_map + single buffer.
    def resident(shape):
        return pl.BlockSpec(shape, lambda i: (0, 0),
                            pipeline_mode=pl.Buffered(1))

    out = pl.pallas_call(
        _dqn_mlp_kernel,
        out_shape=jax.ShapeDtypeStruct((Bp, Ap), out_dtype),
        grid=grid,
        in_specs=[
            pl.BlockSpec((TB, S), lambda i: (i, 0)),   # x: tiled over batch
            resident((S, H)),                          # w1
            resident((1, H)),                          # b1
            resident((H, H)),                          # w2
            resident((1, H)),                          # b2
            resident((H, Ap)),                         # w3
            resident((1, Ap)),                         # b3
        ],
        out_specs=pl.BlockSpec((TB, Ap), lambda i: (i, 0)),
        compiler_params=pltpu.CompilerParams(
            dimension_semantics=("parallel",),
            vmem_limit_bytes=vmem_limit),
        cost_estimate=pl.CostEstimate(
            flops=flops, transcendentals=0, bytes_accessed=bytes_accessed),
    )(x, w1, b1, w2, b2, w3, b3)

    # Slice padded rows / padded action columns back; return f32 like the module.
    return out[:B, :action_dim].astype(jnp.float32)


def init_params(key, state_dim, action_dim, hidden_dim):
    """PyTorch nn.Linear-style init (uniform +/- 1/sqrt(fan_in)).

    Weights stored as (in_dim, out_dim) so the kernel computes x @ W + b.
    """
    keys = jax.random.split(key, 6)

    def linear(kw, kb, fan_in, fan_out):
        bound = 1.0 / jnp.sqrt(jnp.float32(fan_in))
        w = jax.random.uniform(kw, (fan_in, fan_out), jnp.float32, -bound, bound)
        b = jax.random.uniform(kb, (1, fan_out), jnp.float32, -bound, bound)
        return w, b

    w1, b1 = linear(keys[0], keys[1], state_dim, hidden_dim)
    w2, b2 = linear(keys[2], keys[3], hidden_dim, hidden_dim)
    w3, b3 = linear(keys[4], keys[5], hidden_dim, action_dim)
    return w1, b1, w2, b2, w3, b3


def reference_forward(x, w1, b1, w2, b2, w3, b3, use_bf16=True):
    """Pure-JAX reference mirroring the kernel's dtype handling."""
    dt = jnp.bfloat16 if use_bf16 else jnp.float32
    h1 = jnp.maximum(
        jnp.dot(x.astype(dt), w1.astype(dt),
                preferred_element_type=jnp.float32) + b1, 0.0).astype(dt)
    h2 = jnp.maximum(
        jnp.dot(h1, w2.astype(dt),
                preferred_element_type=jnp.float32) + b2, 0.0).astype(dt)
    return jnp.dot(h2, w3.astype(dt), preferred_element_type=jnp.float32) + b3


if __name__ == "__main__":
    # Small shapes consistent with the module: state vector -> Q-value per action.
    batch = 64          # >= 16 so the grid gets 2 steps (v7x megacore exercised)
    state_dim = 16
    hidden_dim = 256    # module default; MXU-native width on v6e/v7x
    action_dim = 4

    key = jax.random.PRNGKey(0)
    k_params, k_x = jax.random.split(key)

    raw_params = init_params(k_params, state_dim, action_dim, hidden_dim)
    params, A = prepare_params(*raw_params, use_bf16=True)   # one-time prep
    x = jax.random.normal(k_x, (batch, state_dim), jnp.float32)

    q = dqn_forward(x, params, action_dim=A, block_b=1024)
    jax.block_until_ready(q)
    assert q.shape == (batch, action_dim)

    # Check vs a reference doing the same bf16-operand / f32-accumulate math
    # (only difference: kernel writes the output back in bf16).
    q_ref = reference_forward(x, *raw_params, use_bf16=True)
    assert jnp.allclose(q, q_ref, atol=2e-2, rtol=2e-2), "mismatch vs bf16 reference"

    # Loose sanity check vs the pure-f32 math of the original PyTorch module
    # (bf16 operand rounding is an intentional precision trade-off).
    q_f32 = reference_forward(x, *raw_params, use_bf16=False)
    assert jnp.allclose(q, q_f32, atol=1e-1, rtol=1e-1), "mismatch vs f32 reference"

    print("KERNEL_OK")
</pallas_src>

<mosaic_0001>
module attributes {stable_mosaic.version = 11 : i64} {
  func.func @_dqn_mlp_kernel(%arg0: i32, %arg1: memref<32x16xbf16, #tpu.memory_space<vmem>>, %arg2: memref<16x256xbf16, #tpu.memory_space<vmem>>, %arg3: memref<1x256xf32, #tpu.memory_space<vmem>>, %arg4: memref<256x256xbf16, #tpu.memory_space<vmem>>, %arg5: memref<1x256xf32, #tpu.memory_space<vmem>>, %arg6: memref<256x128xbf16, #tpu.memory_space<vmem>>, %arg7: memref<1x128xf32, #tpu.memory_space<vmem>>, %arg8: memref<32x128xbf16, #tpu.memory_space<vmem>>) attributes {dimension_semantics = [#tpu.dimension_semantics<parallel>], iteration_bounds = array<i64: 2>, scalar_prefetch = 0 : i64, scratch_operands = 0 : i64, tpu.core_type = #tpu.core_type<tc>, window_params = [{transform_indices = @transform_0, window_bounds = array<i64: 32, 16>}, {pipeline_mode = #tpu.pipeline_mode<synchronous>, transform_indices = @transform_1, window_bounds = array<i64: 16, 256>}, {pipeline_mode = #tpu.pipeline_mode<synchronous>, transform_indices = @transform_2, window_bounds = array<i64: 1, 256>}, {pipeline_mode = #tpu.pipeline_mode<synchronous>, transform_indices = @transform_3, window_bounds = array<i64: 256, 256>}, {pipeline_mode = #tpu.pipeline_mode<synchronous>, transform_indices = @transform_4, window_bounds = array<i64: 1, 256>}, {pipeline_mode = #tpu.pipeline_mode<synchronous>, transform_indices = @transform_5, window_bounds = array<i64: 256, 128>}, {pipeline_mode = #tpu.pipeline_mode<synchronous>, transform_indices = @transform_6, window_bounds = array<i64: 1, 128>}, {transform_indices = @transform_7, window_bounds = array<i64: 32, 128>}]} {
    %c0 = arith.constant 0 : index
    %c0_0 = arith.constant 0 : index
    %0 = vector.load %arg1[%c0, %c0_0] : memref<32x16xbf16, #tpu.memory_space<vmem>>, vector<32x16xbf16>
    %c0_1 = arith.constant 0 : index
    %c0_2 = arith.constant 0 : index
    %1 = vector.load %arg2[%c0_1, %c0_2] : memref<16x256xbf16, #tpu.memory_space<vmem>>, vector<16x256xbf16>
    %cst = arith.constant dense<0.000000e+00> : vector<32x256xf32>
    %2 = tpu.matmul %0, %1, %cst {dimension_numbers = #tpu.dot_dimension_numbers<[1], [0], [0], [1], [0, 0, 1, 1], [], []>} : vector<32x16xbf16>, vector<16x256xbf16>, vector<32x256xf32> -> vector<32x256xf32>
    %c0_3 = arith.constant 0 : index
    %c0_4 = arith.constant 0 : index
    %3 = vector.load %arg3[%c0_3, %c0_4] : memref<1x256xf32, #tpu.memory_space<vmem>>, vector<1x256xf32>
    %4 = vector.broadcast %3 : vector<1x256xf32> to vector<32x256xf32>
    %5 = arith.addf %2, %4 : vector<32x256xf32>
    %cst_5 = arith.constant 0.000000e+00 : f32
    %6 = vector.broadcast %cst_5 : f32 to vector<32x256xf32>
    %7 = arith.maximumf %5, %6 : vector<32x256xf32>
    %8 = arith.truncf %7 : vector<32x256xf32> to vector<32x256xbf16>
    %c0_6 = arith.constant 0 : index
    %c0_7 = arith.constant 0 : index
    %9 = vector.load %arg4[%c0_6, %c0_7] : memref<256x256xbf16, #tpu.memory_space<vmem>>, vector<256x256xbf16>
    %cst_8 = arith.constant dense<0.000000e+00> : vector<32x256xf32>
    %10 = tpu.matmul %8, %9, %cst_8 {dimension_numbers = #tpu.dot_dimension_numbers<[1], [0], [0], [1], [0, 0, 1, 1], [], []>} : vector<32x256xbf16>, vector<256x256xbf16>, vector<32x256xf32> -> vector<32x256xf32>
    %c0_9 = arith.constant 0 : index
    %c0_10 = arith.constant 0 : index
    %11 = vector.load %arg5[%c0_9, %c0_10] : memref<1x256xf32, #tpu.memory_space<vmem>>, vector<1x256xf32>
    %12 = vector.broadcast %11 : vector<1x256xf32> to vector<32x256xf32>
    %13 = arith.addf %10, %12 : vector<32x256xf32>
    %cst_11 = arith.constant 0.000000e+00 : f32
    %14 = vector.broadcast %cst_11 : f32 to vector<32x256xf32>
    %15 = arith.maximumf %13, %14 : vector<32x256xf32>
    %16 = arith.truncf %15 : vector<32x256xf32> to vector<32x256xbf16>
    %c0_12 = arith.constant 0 : index
    %c0_13 = arith.constant 0 : index
    %17 = vector.load %arg6[%c0_12, %c0_13] : memref<256x128xbf16, #tpu.memory_space<vmem>>, vector<256x128xbf16>
    %cst_14 = arith.constant dense<0.000000e+00> : vector<32x128xf32>
    %18 = tpu.matmul %16, %17, %cst_14 {dimension_numbers = #tpu.dot_dimension_numbers<[1], [0], [0], [1], [0, 0, 1, 1], [], []>} : vector<32x256xbf16>, vector<256x128xbf16>, vector<32x128xf32> -> vector<32x128xf32>
    %c0_15 = arith.constant 0 : index
    %c0_16 = arith.constant 0 : index
    %19 = vector.load %arg7[%c0_15, %c0_16] : memref<1x128xf32, #tpu.memory_space<vmem>>, vector<1x128xf32>
    %20 = vector.broadcast %19 : vector<1x128xf32> to vector<32x128xf32>
    %21 = arith.addf %18, %20 : vector<32x128xf32>
    %22 = arith.truncf %21 : vector<32x128xf32> to vector<32x128xbf16>
    %c0_17 = arith.constant 0 : index
    %c0_18 = arith.constant 0 : index
    %23 = vector.load %arg8[%c0_17, %c0_18] : memref<32x128xbf16, #tpu.memory_space<vmem>>, vector<32x128xbf16>
    tpu.vector_store %arg8[%c0_17, %c0_18], %22 {strides = array<i32>} : memref<32x128xbf16, #tpu.memory_space<vmem>>, vector<32x128xbf16>,
    return
  }
  func.func @transform_0(%arg0: i32) -> (i32, i32) {
    %c0_i32 = arith.constant 0 : i32
    %c0_i32_0 = arith.constant 0 : i32
    return %arg0, %c0_i32 : i32, i32
  }
  func.func @transform_1(%arg0: i32) -> (i32, i32) {
    %c0_i32 = arith.constant 0 : i32
    %c0_i32_0 = arith.constant 0 : i32
    %c0_i32_1 = arith.constant 0 : i32
    return %c0_i32, %c0_i32_0 : i32, i32
  }
  func.func @transform_2(%arg0: i32) -> (i32, i32) {
    %c0_i32 = arith.constant 0 : i32
    %c0_i32_0 = arith.constant 0 : i32
    %c0_i32_1 = arith.constant 0 : i32
    return %c0_i32, %c0_i32_0 : i32, i32
  }
  func.func @transform_3(%arg0: i32) -> (i32, i32) {
    %c0_i32 = arith.constant 0 : i32
    %c0_i32_0 = arith.constant 0 : i32
    %c0_i32_1 = arith.constant 0 : i32
    return %c0_i32, %c0_i32_0 : i32, i32
  }
  func.func @transform_4(%arg0: i32) -> (i32, i32) {
    %c0_i32 = arith.constant 0 : i32
    %c0_i32_0 = arith.constant 0 : i32
    %c0_i32_1 = arith.constant 0 : i32
    return %c0_i32, %c0_i32_0 : i32, i32
  }
  func.func @transform_5(%arg0: i32) -> (i32, i32) {
    %c0_i32 = arith.constant 0 : i32
    %c0_i32_0 = arith.constant 0 : i32
    %c0_i32_1 = arith.constant 0 : i32
    return %c0_i32, %c0_i32_0 : i32, i32
  }
  func.func @transform_6(%arg0: i32) -> (i32, i32) {
    %c0_i32 = arith.constant 0 : i32
    %c0_i32_0 = arith.constant 0 : i32
    %c0_i32_1 = arith.constant 0 : i32
    return %c0_i32, %c0_i32_0 : i32, i32
  }
  func.func @transform_7(%arg0: i32) -> (i32, i32) {
    %c0_i32 = arith.constant 0 : i32
    %c0_i32_0 = arith.constant 0 : i32
    return %arg0, %c0_i32 : i32, i32
  }
}

</mosaic_0001>

<llo_original>
// kernel: dqn_forward.1
$region0: #{dqn_forward.1}
  #allocation0 [shape = 'u32[]', space=smem, size = 0x4, offset = 0x4, fixed_abs, tag = 'smem constant byte address 0x4 - core index']
  #allocation1 [shape = 'u32[72,128]{1,0:T(1,128)}', space=vmem, size = 0x9000, scoped, tag = 'internal scratch']
  %s0 = inlined_call_operand.vmem [shape: bf16[64,16], index: 0, kind: input, shape index: {}]
  %s1 = inlined_call_operand.vmem [shape: bf16[16,256], index: 1, kind: input, shape index: {}]
  %s2 = inlined_call_operand.vmem [shape: f32[1,256], index: 2, kind: input, shape index: {}]
  %s3 = inlined_call_operand.hbm [shape: bf16[256,256], index: 3, kind: input, shape index: {}]
  %s4 = inlined_call_operand.vmem [shape: f32[1,256], index: 4, kind: input, shape index: {}]
  %s5 = inlined_call_operand.hbm [shape: bf16[256,128], index: 5, kind: input, shape index: {}]
  %s6 = inlined_call_operand.vmem [shape: f32[1,128], index: 6, kind: input, shape index: {}]
  %s7 = inlined_call_operand.vmem [shape: bf16[64,128], index: 7, kind: output, shape index: {}]
  %s8 = sld [smem:[#allocation0]]
  $region69: #{dqn_forward.1} parent=0
    _
  %s10 = ssub.s32 1, %s8
  %s11 = scalar_select 0, %s10, %s8
  $region1: #{dqn_forward.1} parent=0
    #allocation2 [shape = 'u8[131072]{0}', space=vmem, size = 0x20000, scoped, tag = 'input window, operand 3, single buffered']
    #allocation3 [shape = 's32[2]{0}', space=sflag, size = 0x8, scoped, tag = 'scoped memory for dqn_forward.1']
    #allocation4 [shape = 'u8[65536]{0}', space=vmem, size = 0x10000, scoped, tag = 'input window, operand 5, single buffered']
    #allocation5 [shape = 's32[1]{0}', space=sflag, size = 0x4, scoped, tag = 'scoped memory for dqn_forward.1']
    %12 = vsyncpa [#allocation3], 0
    %13 = vsyncpa [#allocation5], 0
    loop: start=0, step=1, limit=4
    $region2: #{dqn_forward.1} parent=1 // loop_pre_header
      _
    $region3: #{dqn_forward.1} parent=1 // loop_header
      %s15 = sphi 0, %s19
      %p16 = scmp.ge.s32.totalorder %s15, 4
      %s25 = sphi 0, %s27
      %s28 = sphi 0, %s25
      %s29 = sphi 0, %s28
      %s45 = sphi 0, %s29
      %s49 = sphi 0, %s49
      %s51 = sphi 0, %s49
      %s52 = sphi 0, %s51
      %s66 = sphi 0, %s52
      %s70 = sphi 0, %s70
      %s72 = sphi 0, %s70
      %s73 = sphi 0, %s72
      %s87 = sphi 0, %s73
      %s91 = sphi 0, %s91
      %s93 = sphi 0, %s91
      %s94 = sphi 0, %s93
      %s108 = sphi 0, %s94
      %s112 = sphi 0, %s112
      %s114 = sphi 0, %s112
      %s115 = sphi 0, %s114
      %s129 = sphi 0, %s115
      %s133 = sphi 0, %s133
      %s135 = sphi 0, %s133
      %s136 = sphi 0, %s135
      %s150 = sphi 0, %s136
      %s154 = sphi 0, %s154
      %s156 = sphi 0, %s154
      %s157 = sphi 0, %s156
      %s171 = sphi 0, %s157
      %s177 = sphi 0, %s179
      %s180 = sphi 0, %s177
      %s181 = sphi 0, %s180
      %s197 = sphi 0, %s181
    $region4: #{dqn_forward.1} parent=1 // loop_header_branch
      %18 = sbr.rel (%p16) target = $region8
    $region5: #{dqn_forward.1} parent=1 // loop_body
      %s20 = ssub.s32 %s15, 1
      %s21 = ssub.s32 %s15, 2
      %s22 = sadd.s32 %s15, 1
      %s23 = ssub.s32 %s15, %s22
      %p24 = scmp.eq.s32.totalorder %s23, 0
      %s26 = sadd.s32 %s25, 1
      %s27 = scalar_select %p24, %s25, %s26
      %p30 = pneg %p24
      %p31 = scmp.eq.s32.totalorder %s15, 1
      %p32 = por %p30, %p31
      %p33 = scmp.ne.s32.totalorder %s25, %s28
      %p34 = scmp.eq.s32.totalorder %s15, 0
      %p35 = por %p33, %p34
      %p36 = scmp.ne.s32.totalorder %s25, %s28
      %p37 = scmp.eq.s32.totalorder %s20, 1
      %p38 = por %p36, %p37
      %p39 = scmp.ne.s32.totalorder %s28, %s29
      %p40 = scmp.eq.s32.totalorder %s20, 0
      %p41 = por %p39, %p40
      %p42 = scmp.ne.s32.totalorder %s28, %s29
      %p43 = scmp.eq.s32.totalorder %s21, 1
      %p44 = por %p42, %p43
      %p46 = scmp.ne.s32.totalorder %s29, %s45
      %p47 = scmp.eq.s32.totalorder %s21, 0
      %p48 = por %p46, %p47
      %s50 = sadd.s32 %s49, 1
      %p53 = scmp.eq.s32.totalorder %s15, 1
      %p54 = scmp.ne.s32.totalorder %s49, %s51
      %p55 = scmp.eq.s32.totalorder %s15, 0
      %p56 = por %p54, %p55
      %p57 = scmp.ne.s32.totalorder %s49, %s51
      %p58 = scmp.eq.s32.totalorder %s20, 1
      %p59 = por %p57, %p58
      %p60 = scmp.ne.s32.totalorder %s51, %s52
      %p61 = scmp.eq.s32.totalorder %s20, 0
      %p62 = por %p60, %p61
      %p63 = scmp.ne.s32.totalorder %s51, %s52
      %p64 = scmp.eq.s32.totalorder %s21, 1
      %p65 = por %p63, %p64
      %p67 = scmp.ne.s32.totalorder %s52, %s66
      %p68 = scmp.eq.s32.totalorder %s21, 0
      %p69 = por %p67, %p68
      %s71 = sadd.s32 %s70, 1
      %p74 = scmp.eq.s32.totalorder %s15, 1
      %p75 = scmp.ne.s32.totalorder %s70, %s72
      %p76 = scmp.eq.s32.totalorder %s15, 0
      %p77 = por %p75, %p76
      %p78 = scmp.ne.s32.totalorder %s70, %s72
      %p79 = scmp.eq.s32.totalorder %s20, 1
      %p80 = por %p78, %p79
      %p81 = scmp.ne.s32.totalorder %s72, %s73
      %p82 = scmp.eq.s32.totalorder %s20, 0
      %p83 = por %p81, %p82
      %p84 = scmp.ne.s32.totalorder %s72, %s73
      %p85 = scmp.eq.s32.totalorder %s21, 1
      %p86 = por %p84, %p85
      %p88 = scmp.ne.s32.totalorder %s73, %s87
      %p89 = scmp.eq.s32.totalorder %s21, 0
      %p90 = por %p88, %p89
      %s92 = sadd.s32 %s91, 1
      %p95 = scmp.eq.s32.totalorder %s15, 1
      %p96 = scmp.ne.s32.totalorder %s91, %s93
      %p97 = scmp.eq.s32.totalorder %s15, 0
      %p98 = por %p96, %p97
      %p99 = scmp.ne.s32.totalorder %s91, %s93
      %p100 = scmp.eq.s32.totalorder %s20, 1
      %p101 = por %p99, %p100
      %p102 = scmp.ne.s32.totalorder %s93, %s94
      %p103 = scmp.eq.s32.totalorder %s20, 0
      %p104 = por %p102, %p103
      %p105 = scmp.ne.s32.totalorder %s93, %s94
      %p106 = scmp.eq.s32.totalorder %s21, 1
      %p107 = por %p105, %p106
      %p109 = scmp.ne.s32.totalorder %s94, %s108
      %p110 = scmp.eq.s32.totalorder %s21, 0
      %p111 = por %p109, %p110
      %s113 = sadd.s32 %s112, 1
      %p116 = scmp.eq.s32.totalorder %s15, 1
      %p117 = scmp.ne.s32.totalorder %s112, %s114
      %p118 = scmp.eq.s32.totalorder %s15, 0
      %p119 = por %p117, %p118
      %p120 = scmp.ne.s32.totalorder %s112, %s114
      %p121 = scmp.eq.s32.totalorder %s20, 1
      %p122 = por %p120, %p121
      %p123 = scmp.ne.s32.totalorder %s114, %s115
      %p124 = scmp.eq.s32.totalorder %s20, 0
      %p125 = por %p123, %p124
      %p126 = scmp.ne.s32.totalorder %s114, %s115
      %p127 = scmp.eq.s32.totalorder %s21, 1
      %p128 = por %p126, %p127
      %p130 = scmp.ne.s32.totalorder %s115, %s129
      %p131 = scmp.eq.s32.totalorder %s21, 0
      %p132 = por %p130, %p131
      %s134 = sadd.s32 %s133, 1
      %p137 = scmp.eq.s32.totalorder %s15, 1
      %p138 = scmp.ne.s32.totalorder %s133, %s135
      %p139 = scmp.eq.s32.totalorder %s15, 0
      %p140 = por %p138, %p139
      %p141 = scmp.ne.s32.totalorder %s133, %s135
      %p142 = scmp.eq.s32.totalorder %s20, 1
      %p143 = por %p141, %p142
      %p144 = scmp.ne.s32.totalorder %s135, %s136
      %p145 = scmp.eq.s32.totalorder %s20, 0
      %p146 = por %p144, %p145
      %p147 = scmp.ne.s32.totalorder %s135, %s136
      %p148 = scmp.eq.s32.totalorder %s21, 1
      %p149 = por %p147, %p148
      %p151 = scmp.ne.s32.totalorder %s136, %s150
      %p152 = scmp.eq.s32.totalorder %s21, 0
      %p153 = por %p151, %p152
      %s155 = sadd.s32 %s154, 1
      %p158 = scmp.eq.s32.totalorder %s15, 1
      %p159 = scmp.ne.s32.totalorder %s154, %s156
      %p160 = scmp.eq.s32.totalorder %s15, 0
      %p161 = por %p159, %p160
      %p162 = scmp.ne.s32.totalorder %s154, %s156
      %p163 = scmp.eq.s32.totalorder %s20, 1
      %p164 = por %p162, %p163
      %p165 = scmp.ne.s32.totalorder %s156, %s157
      %p166 = scmp.eq.s32.totalorder %s20, 0
      %p167 = por %p165, %p166
      %p168 = scmp.ne.s32.totalorder %s156, %s157
      %p169 = scmp.eq.s32.totalorder %s21, 1
      %p170 = por %p168, %p169
      %p172 = scmp.ne.s32.totalorder %s157, %s171
      %p173 = scmp.eq.s32.totalorder %s21, 0
      %p174 = por %p172, %p173
      %s175 = ssub.s32 %s15, %s22
      %p176 = scmp.eq.s32.totalorder %s175, 0
      %s178 = sadd.s32 %s177, 1
      %s179 = scalar_select %p176, %s177, %s178
      %p182 = pneg %p176
      %p183 = scmp.eq.s32.totalorder %s15, 1
      %p184 = por %p182, %p183
      %p185 = scmp.ne.s32.totalorder %s177, %s180
      %p186 = scmp.eq.s32.totalorder %s15, 0
      %p187 = por %p185, %p186
      %p188 = scmp.ne.s32.totalorder %s177, %s180
      %p189 = scmp.eq.s32.totalorder %s20, 1
      %p190 = por %p188, %p189
      %p191 = scmp.ne.s32.totalorder %s180, %s181
      %p192 = scmp.eq.s32.totalorder %s20, 0
      %p193 = por %p191, %p192
      %p194 = scmp.ne.s32.totalorder %s180, %s181
      %p195 = scmp.eq.s32.totalorder %s21, 1
      %p196 = por %p194, %p195
      %p198 = scmp.ne.s32.totalorder %s181, %s197
      %p199 = scmp.eq.s32.totalorder %s21, 0
      %p200 = por %p198, %p199
      %p201 = scmp.le.s32.totalorder 1, %s15
      %p202 = scmp.lt.s32.totalorder %s15, 3
      %p203 = pnand %p201, %p202
      %p204 = pneg %p203
      // Predicated region
      $region9: #{dqn_forward.1} parent=5 // pred_check
        _
      $region10: #{dqn_forward.1} parent=5 // pred_check_branch
        %206 = sbr.rel (%p203) target = $region12
      $region11: #{dqn_forward.1} parent=5 // pred_region
        %s207 = ssub.s32 %s15, 1
        // Predicated region
        $region13: #{dqn_forward.1} parent=11 // pred_check
          %p208 = pneg %p62
        $region14: #{dqn_forward.1} parent=11 // pred_check_branch
          %210 = sbr.rel (%p208) target = $region16
        $region15: #{dqn_forward.1} parent=11 // pred_region
          _
        $region16: #{dqn_forward.1} parent=11 // pred_fallthru
          _
        // Predicated region
        $region17: #{dqn_forward.1} parent=11 // pred_check
          %p211 = pneg %p83
        $region18: #{dqn_forward.1} parent=11 // pred_check_branch
          %213 = sbr.rel (%p211) target = $region20
        $region19: #{dqn_forward.1} parent=11 // pred_region
          _
        $region20: #{dqn_forward.1} parent=11 // pred_fallthru
          _
        // Predicated region
        $region21: #{dqn_forward.1} parent=11 // pred_check
          %p214 = pneg %p104
        $region22: #{dqn_forward.1} parent=11 // pred_check_branch
          %216 = sbr.rel (%p214) target = $region24
        $region23: #{dqn_forward.1} parent=11 // pred_region
          %218 = vsyncadd [#allocation3], 0
          %s219 = sshll.u32 %s3, 4
          %s220 = int_to_ptr.hbm [resolvable:$true] %s219
          %s221 = sshll.u32 [#allocation2], 4
          %s222 = int_to_ptr.vmem [resolvable:$true] %s221
          %227 = dma.hbm_to_vmem [thread:$0]  %s220, 4096, %s222, [#allocation3], 128, 128, 8
        $region24: #{dqn_forward.1} parent=11 // pred_fallthru
          _
        // Predicated region
        $region25: #{dqn_forward.1} parent=11 // pred_check
          %p228 = pneg %p125
        $region26: #{dqn_forward.1} parent=11 // pred_check_branch
          %230 = sbr.rel (%p228) target = $region28
        $region27: #{dqn_forward.1} parent=11 // pred_region
          _
        $region28: #{dqn_forward.1} parent=11 // pred_fallthru
          _
        // Predicated region
        $region29: #{dqn_forward.1} parent=11 // pred_check
          %p231 = pneg %p146
        $region30: #{dqn_forward.1} parent=11 // pred_check_branch
          %233 = sbr.rel (%p231) target = $region32
        $region31: #{dqn_forward.1} parent=11 // pred_region
          %235 = vsyncadd [#allocation5], 0
          %s236 = sshll.u32 %s5, 4
          %s237 = int_to_ptr.hbm [resolvable:$true] %s236
          %s238 = sshll.u32 [#allocation4], 4
          %s239 = int_to_ptr.vmem [resolvable:$true] %s238
          %244 = dma.hbm_to_vmem [thread:$0]  %s237, 2048, %s239, [#allocation5], 64, 64, 4
        $region32: #{dqn_forward.1} parent=11 // pred_fallthru
          _
        // Predicated region
        $region33: #{dqn_forward.1} parent=11 // pred_check
          %p245 = pneg %p167
        $region34: #{dqn_forward.1} parent=11 // pred_check_branch
          %247 = sbr.rel (%p245) target = $region36
        $region35: #{dqn_forward.1} parent=11 // pred_region
          _
        $region36: #{dqn_forward.1} parent=11 // pred_fallthru
          _
      $region12: #{dqn_forward.1} parent=5 // pred_fallthru
        _
      %p248 = scmp.lt.s32.totalorder %s15, 2
      // Predicated region
      $region37: #{dqn_forward.1} parent=5 // pred_check
        %p249 = pneg %p248
      $region38: #{dqn_forward.1} parent=5 // pred_check_branch
        %251 = sbr.rel (%p249) target = $region40
      $region39: #{dqn_forward.1} parent=5 // pred_region
        // Predicated region
        $region41: #{dqn_forward.1} parent=39 // pred_check
          %p252 = pneg %p35
        $region42: #{dqn_forward.1} parent=39 // pred_check_branch
          %254 = sbr.rel (%p252) target = $region44
        $region43: #{dqn_forward.1} parent=39 // pred_region
          %s255 = smul.u32 4, %s15
          %p256 = scmp.lt.s32.totalorder %s255, 7
          %s257 = scalar_select %p256, %s255, 7
          %s258 = smul.addr %s257, 4
          %s259 = scalar_lea.vmem %s0, %s258
          %s260 = smul.u32 4, %s15
        $region44: #{dqn_forward.1} parent=39 // pred_fallthru
          _
      $region40: #{dqn_forward.1} parent=5 // pred_fallthru
        _
      %p261 = scmp.le.s32.totalorder 1, %s15
      %p262 = scmp.lt.s32.totalorder %s15, 3
      %p263 = pnand %p261, %p262
      %p264 = pneg %p263
      // Predicated region
      $region45: #{dqn_forward.1} parent=5 // pred_check
        _
      $region46: #{dqn_forward.1} parent=5 // pred_check_branch
        %266 = sbr.rel (%p263) target = $region48
      $region47: #{dqn_forward.1} parent=5 // pred_region
        %s267 = ssub.s32 %s15, 1
        // Predicated region
        $region49: #{dqn_forward.1} parent=47 // pred_check
          %p268 = pneg %p104
        $region50: #{dqn_forward.1} parent=47 // pred_check_branch
          %270 = sbr.rel (%p268) target = $region52
        $region51: #{dqn_forward.1} parent=47 // pred_region
          %272 = dma.done [#allocation3], 4096
        $region52: #{dqn_forward.1} parent=47 // pred_fallthru
          _
        // Predicated region
        $region53: #{dqn_forward.1} parent=47 // pred_check
          %p273 = pneg %p146
        $region54: #{dqn_forward.1} parent=47 // pred_check_branch
          %275 = sbr.rel (%p273) target = $region56
        $region55: #{dqn_forward.1} parent=47 // pred_region
          %277 = dma.done [#allocation5], 2048
        $region56: #{dqn_forward.1} parent=47 // pred_fallthru
          _
        %s278 = smul.u32 4, %s20
        %p279 = scmp.lt.s32.totalorder %s278, 7
        %s280 = scalar_select %p279, %s278, 7
        %s281 = smul.addr %s280, 4
        %s282 = scalar_lea.vmem %s0, %s281
        %p283 = pneg %p41
        %p284 = pneg %p38
        %p285 = pneg %p62
        %p286 = pneg %p59
        %p287 = pneg %p83
        %p288 = pneg %p80
        %p289 = pneg %p104
        %p290 = pneg %p101
        %p291 = pneg %p125
        %p292 = pneg %p122
        %p293 = pneg %p146
        %p294 = pneg %p143
        %p295 = pneg %p167
        %p296 = pneg %p164
        %p297 = pneg %p193
        %p298 = pneg %p190
        %s299 = smul.u32 4, %s20
        %p300 = scmp.lt.s32.totalorder %s299, 7
        %s301 = scalar_select %p300, %s299, 7
        %s302 = smul.addr %s301, 4
        %s303 = scalar_lea.vmem %s7, %s302
        %s304 = smul.u32 4, %s20
        %p305 = scmp.lt.s32.totalorder %s304, 7
        %s306 = scalar_select %p305, %s304, 7
        %s307 = smul.addr %s306, 4
        %s308 = scalar_lea.vmem %s0, %s307
        %s309 = smul.u32 4, %s20
        %s310 = smul.u32 4, %s20
        %p311 = scmp.lt.s32.totalorder %s310, 7
        %s312 = scalar_select %p311, %s310, 7
        %s313 = smul.addr %s312, 4
        %s314 = scalar_lea.vmem %s7, %s313
        %s315 = smul.u32 4, %s20
        %v317 = vld [vmem:[%s308] sm:$0xf]
        %v318 = vld [vmem:[%s308 + $0x4] sm:$0xf]
        %v319 = vld [vmem:[%s308 + $0x8] sm:$0xf]
        %v320 = vld [vmem:[%s308 + $0xc] sm:$0xf]
        %v321 = vld [vmem:[%s1] sm:$0xff]
        %v322 = vld [vmem:[%s1 + $0x8] sm:$0xff]
        %v323 = vld [vmem:[%s2] sm:$0x3]
        %v325 = vperm.slane %v323, 0
        %v326 = vperm.slane %v323, 1
        %v333 = vunpack.c.l.b16 %v317
        %v334 = vunpack.c.l.b16 %v318
        %v335 = vunpack.c.l.b16 %v319
        %v336 = vunpack.c.l.b16 %v320
        %v337 = vpack.c.b16 %v334, %v333
        %v338 = vpack.c.b16 %v336, %v335
        %v341 = vunpack.c.l.b16 %v321
        %v342 = vunpack.c.h.b16 %v321
        %v343 = vunpack.c.l.b16 %v322
        %v344 = vunpack.c.h.b16 %v322
        %v345 = vpack.c.b16 %v343, %v341
        %v346 = vpack.c.b16 %v344, %v342
        %vm349 = vcmask 130048
        %v351 = vsel %vm349, %v337, 0
        %v354 = vsel %vm349, %v338, 0
        %356 = vmatpush.bf16.msra.mxu0 0
        %357 = vmatpush.bf16.msra.mxu0 0
        %358 = vmatpush.bf16.msra.mxu0 0
        %359 = vmatpush.bf16.msra.mxu0 0
        %360 = vmatpush.bf16.msra.mxu0 0
        %361 = vmatpush.bf16.msra.mxu0 0
        %362 = vmatpush.bf16.msra.mxu0 0
        %363 = vmatpush.bf16.msra.mxu0 %v345
        %364 = vmatmul.bf16.gmra.mxu0 %v351
        %v365 = vpop.f32.mrf.mxu0
        %v366 = vadd.f32 %v325, %v365
        %v367 = vpop.f32.mrf.mxu0
        %v368 = vadd.f32 %v325, %v367
        %369 = vmatmul.bf16.gmra.mxu0 %v354
        %v370 = vpop.f32.mrf.mxu0
        %v371 = vadd.f32 %v325, %v370
        %v372 = vpop.f32.mrf.mxu0
        %v373 = vadd.f32 %v325, %v372
        %374 = vdwg.mxu0
        %375 = vmatpush.bf16.msra.mxu0 0
        %376 = vmatpush.bf16.msra.mxu0 0
        %377 = vmatpush.bf16.msra.mxu0 0
        %378 = vmatpush.bf16.msra.mxu0 0
        %379 = vmatpush.bf16.msra.mxu0 0
        %380 = vmatpush.bf16.msra.mxu0 0
        %381 = vmatpush.bf16.msra.mxu0 0
        %382 = vmatpush.bf16.msra.mxu0 %v346
        %383 = vmatmul.bf16.gmra.mxu0 %v351
        %v384 = vpop.f32.mrf.mxu0
        %v385 = vadd.f32 %v326, %v384
        %v386 = vpop.f32.mrf.mxu0
        %v387 = vadd.f32 %v326, %v386
        %388 = vmatmul.bf16.gmra.mxu0 %v354
        %v389 = vpop.f32.mrf.mxu0
        %v390 = vadd.f32 %v326, %v389
        %v391 = vpop.f32.mrf.mxu0
        %v392 = vadd.f32 %v326, %v391
        %393 = vdwg.mxu0
        %v394 = vmax.f32 %v366, 0.0
        %v395 = vmax.f32 %v385, 0.0
        %v396 = vmax.f32 %v368, 0.0
        %v397 = vmax.f32 %v387, 0.0
        %v398 = vmax.f32 %v371, 0.0
        %v399 = vmax.f32 %v390, 0.0
        %v400 = vmax.f32 %v373, 0.0
        %v401 = vmax.f32 %v392, 0.0
        %v402 = vpack.c.bf16 %v396, %v394
        %v403 = vpack.c.bf16 %v397, %v395
        %v404 = vpack.c.bf16 %v400, %v398
        %v405 = vpack.c.bf16 %v401, %v399
        %v406 = vld [vmem:[#allocation2] sm:$0xff]
        %v407 = vld [vmem:[#allocation2 + $0x8] sm:$0xff]
        %v408 = vld [vmem:[#allocation2 + $0x10] sm:$0xff]
        %v409 = vld [vmem:[#allocation2 + $0x18] sm:$0xff]
        %v410 = vld [vmem:[#allocation2 + $0x20] sm:$0xff]
        %v411 = vld [vmem:[#allocation2 + $0x28] sm:$0xff]
        %v412 = vld [vmem:[#allocation2 + $0x30] sm:$0xff]
        %v413 = vld [vmem:[#allocation2 + $0x38] sm:$0xff]
        %v414 = vld [vmem:[#allocation2 + $0x40] sm:$0xff]
        %v415 = vld [vmem:[#allocation2 + $0x48] sm:$0xff]
        %v416 = vld [vmem:[#allocation2 + $0x50] sm:$0xff]
        %v417 = vld [vmem:[#allocation2 + $0x58] sm:$0xff]
        %v418 = vld [vmem:[#allocation2 + $0x60] sm:$0xff]
        %v419 = vld [vmem:[#allocation2 + $0x68] sm:$0xff]
        %v420 = vld [vmem:[#allocation2 + $0x70] sm:$0xff]
        %v421 = vld [vmem:[#allocation2 + $0x78] sm:$0xff]
        %v422 = vld [vmem:[#allocation2 + $0x80] sm:$0xff]
        %v423 = vld [vmem:[#allocation2 + $0x88] sm:$0xff]
        %v424 = vld [vmem:[#allocation2 + $0x90] sm:$0xff]
        %v425 = vld [vmem:[#allocation2 + $0x98] sm:$0xff]
        %v426 = vld [vmem:[#allocation2 + $0xa0] sm:$0xff]
        %v427 = vld [vmem:[#allocation2 + $0xa8] sm:$0xff]
        %v428 = vld [vmem:[#allocation2 + $0xb0] sm:$0xff]
        %v429 = vld [vmem:[#allocation2 + $0xb8] sm:$0xff]
        %v430 = vld [vmem:[#allocation2 + $0xc0] sm:$0xff]
        %v431 = vld [vmem:[#allocation2 + $0xc8] sm:$0xff]
        %v432 = vld [vmem:[#allocation2 + $0xd0] sm:$0xff]
        %v433 = vld [vmem:[#allocation2 + $0xd8] sm:$0xff]
        %v434 = vld [vmem:[#allocation2 + $0xe0] sm:$0xff]
        %v435 = vld [vmem:[#allocation2 + $0xe8] sm:$0xff]
        %v436 = vld [vmem:[#allocation2 + $0xf0] sm:$0xff]
        %v437 = vld [vmem:[#allocation2 + $0xf8] sm:$0xff]
        %v438 = vld [vmem:[%s4] sm:$0x3]
        %v440 = vperm.slane %v438, 0
        %v441 = vperm.slane %v438, 1
        %v476 = vunpack.c.l.b16 %v406
        %v477 = vunpack.c.h.b16 %v406
        %v478 = vunpack.c.l.b16 %v407
        %v479 = vunpack.c.h.b16 %v407
        %v480 = vunpack.c.l.b16 %v408
        %v481 = vunpack.c.h.b16 %v408
        %v482 = vunpack.c.l.b16 %v409
        %v483 = vunpack.c.h.b16 %v409
        %v484 = vunpack.c.l.b16 %v410
        %v485 = vunpack.c.h.b16 %v410
        %v486 = vunpack.c.l.b16 %v411
        %v487 = vunpack.c.h.b16 %v411
        %v488 = vunpack.c.l.b16 %v412
        %v489 = vunpack.c.h.b16 %v412
        %v490 = vunpack.c.l.b16 %v413
        %v491 = vunpack.c.h.b16 %v413
        %v492 = vunpack.c.l.b16 %v414
        %v493 = vunpack.c.h.b16 %v414
        %v494 = vunpack.c.l.b16 %v415
        %v495 = vunpack.c.h.b16 %v415
        %v496 = vunpack.c.l.b16 %v416
        %v497 = vunpack.c.h.b16 %v416
        %v498 = vunpack.c.l.b16 %v417
        %v499 = vunpack.c.h.b16 %v417
        %v500 = vunpack.c.l.b16 %v418
        %v501 = vunpack.c.h.b16 %v418
        %v502 = vunpack.c.l.b16 %v419
        %v503 = vunpack.c.h.b16 %v419
        %v504 = vunpack.c.l.b16 %v420
        %v505 = vunpack.c.h.b16 %v420
        %v506 = vunpack.c.l.b16 %v421
        %v507 = vunpack.c.h.b16 %v421
        %v508 = vunpack.c.l.b16 %v422
        %v509 = vunpack.c.h.b16 %v422
        %v510 = vunpack.c.l.b16 %v423
        %v511 = vunpack.c.h.b16 %v423
        %v512 = vunpack.c.l.b16 %v424
        %v513 = vunpack.c.h.b16 %v424
        %v514 = vunpack.c.l.b16 %v425
        %v515 = vunpack.c.h.b16 %v425
        %v516 = vunpack.c.l.b16 %v426
        %v517 = vunpack.c.h.b16 %v426
        %v518 = vunpack.c.l.b16 %v427
        %v519 = vunpack.c.h.b16 %v427
        %v520 = vunpack.c.l.b16 %v428
        %v521 = vunpack.c.h.b16 %v428
        %v522 = vunpack.c.l.b16 %v429
        %v523 = vunpack.c.h.b16 %v429
        %v524 = vunpack.c.l.b16 %v430
        %v525 = vunpack.c.h.b16 %v430
        %v526 = vunpack.c.l.b16 %v431
        %v527 = vunpack.c.h.b16 %v431
        %v528 = vunpack.c.l.b16 %v432
        %v529 = vunpack.c.h.b16 %v432
        %v530 = vunpack.c.l.b16 %v433
        %v531 = vunpack.c.h.b16 %v433
        %v532 = vunpack.c.l.b16 %v434
        %v533 = vunpack.c.h.b16 %v434
        %v534 = vunpack.c.l.b16 %v435
        %v535 = vunpack.c.h.b16 %v435
        %v536 = vunpack.c.l.b16 %v436
        %v537 = vunpack.c.h.b16 %v436
        %v538 = vunpack.c.l.b16 %v437
        %v539 = vunpack.c.h.b16 %v437
        %v540 = vpack.c.b16 %v478, %v476
        %v541 = vpack.c.b16 %v479, %v477
        %v542 = vpack.c.b16 %v482, %v480
        %v543 = vpack.c.b16 %v483, %v481
        %v544 = vpack.c.b16 %v486, %v484
        %v545 = vpack.c.b16 %v487, %v485
        %v546 = vpack.c.b16 %v490, %v488
        %v547 = vpack.c.b16 %v491, %v489
        %v548 = vpack.c.b16 %v494, %v492
        %v549 = vpack.c.b16 %v495, %v493
        %v550 = vpack.c.b16 %v498, %v496
        %v551 = vpack.c.b16 %v499, %v497
        %v552 = vpack.c.b16 %v502, %v500
        %v553 = vpack.c.b16 %v503, %v501
        %v554 = vpack.c.b16 %v506, %v504
        %v555 = vpack.c.b16 %v507, %v505
        %v556 = vpack.c.b16 %v510, %v508
        %v557 = vpack.c.b16 %v511, %v509
        %v558 = vpack.c.b16 %v514, %v512
        %v559 = vpack.c.b16 %v515, %v513
        %v560 = vpack.c.b16 %v518, %v516
        %v561 = vpack.c.b16 %v519, %v517
        %v562 = vpack.c.b16 %v522, %v520
        %v563 = vpack.c.b16 %v523, %v521
        %v564 = vpack.c.b16 %v526, %v524
        %v565 = vpack.c.b16 %v527, %v525
        %v566 = vpack.c.b16 %v530, %v528
        %v567 = vpack.c.b16 %v531, %v529
        %v568 = vpack.c.b16 %v534, %v532
        %v569 = vpack.c.b16 %v535, %v533
        %v570 = vpack.c.b16 %v538, %v536
        %v571 = vpack.c.b16 %v539, %v537
        %604 = vmatpush.bf16.msra.mxu0 %v554
        %605 = vmatpush.bf16.msra.mxu0 %v552
        %606 = vmatpush.bf16.msra.mxu0 %v550
        %607 = vmatpush.bf16.msra.mxu0 %v548
        %608 = vmatpush.bf16.msra.mxu0 %v546
        %609 = vmatpush.bf16.msra.mxu0 %v544
        %610 = vmatpush.bf16.msra.mxu0 %v542
        %611 = vmatpush.bf16.msra.mxu0 %v540
        %612 = vmatmul.bf16.gmra.mxu0 %v402
        %v613 = vpop.f32.mrf.mxu0
        %v614 = vadd.f32 %v440, %v613
        %v615 = vpop.f32.mrf.mxu0
        %v616 = vadd.f32 %v440, %v615
        %617 = vmatmul.bf16.gmra.mxu0 %v404
        %v618 = vpop.f32.mrf.mxu0
        %v619 = vadd.f32 %v440, %v618
        %v620 = vpop.f32.mrf.mxu0
        %v621 = vadd.f32 %v440, %v620
        %622 = vdwg.mxu0
        %623 = vmatpush.bf16.msra.mxu0 %v570
        %624 = vmatpush.bf16.msra.mxu0 %v568
        %625 = vmatpush.bf16.msra.mxu0 %v566
        %626 = vmatpush.bf16.msra.mxu0 %v564
        %627 = vmatpush.bf16.msra.mxu0 %v562
        %628 = vmatpush.bf16.msra.mxu0 %v560
        %629 = vmatpush.bf16.msra.mxu0 %v558
        %630 = vmatpush.bf16.msra.mxu0 %v556
        %631 = vmatmul.bf16.gmra.mxu0 %v403
        %v632 = vpop.f32.mrf.mxu0
        %v633 = vadd.f32 %v614, %v632
        %v634 = vpop.f32.mrf.mxu0
        %v635 = vadd.f32 %v616, %v634
        %636 = vmatmul.bf16.gmra.mxu0 %v405
        %v637 = vpop.f32.mrf.mxu0
        %v638 = vadd.f32 %v619, %v637
        %v639 = vpop.f32.mrf.mxu0
        %v640 = vadd.f32 %v621, %v639
        %641 = vdwg.mxu0
        %642 = vmatpush.bf16.msra.mxu0 %v555
        %643 = vmatpush.bf16.msra.mxu0 %v553
        %644 = vmatpush.bf16.msra.mxu0 %v551
        %645 = vmatpush.bf16.msra.mxu0 %v549
        %646 = vmatpush.bf16.msra.mxu0 %v547
        %647 = vmatpush.bf16.msra.mxu0 %v545
        %648 = vmatpush.bf16.msra.mxu0 %v543
        %649 = vmatpush.bf16.msra.mxu0 %v541
        %650 = vmatmul.bf16.gmra.mxu0 %v402
        %v651 = vpop.f32.mrf.mxu0
        %v652 = vadd.f32 %v441, %v651
        %v653 = vpop.f32.mrf.mxu0
        %v654 = vadd.f32 %v441, %v653
        %655 = vmatmul.bf16.gmra.mxu0 %v404
        %v656 = vpop.f32.mrf.mxu0
        %v657 = vadd.f32 %v441, %v656
        %v658 = vpop.f32.mrf.mxu0
        %v659 = vadd.f32 %v441, %v658
        %660 = vdwg.mxu0
        %661 = vmatpush.bf16.msra.mxu0 %v571
        %662 = vmatpush.bf16.msra.mxu0 %v569
        %663 = vmatpush.bf16.msra.mxu0 %v567
        %664 = vmatpush.bf16.msra.mxu0 %v565
        %665 = vmatpush.bf16.msra.mxu0 %v563
        %666 = vmatpush.bf16.msra.mxu0 %v561
        %667 = vmatpush.bf16.msra.mxu0 %v559
        %668 = vmatpush.bf16.msra.mxu0 %v557
        %669 = vmatmul.bf16.gmra.mxu0 %v403
        %v670 = vpop.f32.mrf.mxu0
        %v671 = vadd.f32 %v652, %v670
        %v672 = vpop.f32.mrf.mxu0
        %v673 = vadd.f32 %v654, %v672
        %674 = vmatmul.bf16.gmra.mxu0 %v405
        %v675 = vpop.f32.mrf.mxu0
        %v676 = vadd.f32 %v657, %v675
        %v677 = vpop.f32.mrf.mxu0
        %v678 = vadd.f32 %v659, %v677
        %679 = vdwg.mxu0
        %v680 = vmax.f32 %v633, 0.0
        %v681 = vmax.f32 %v671, 0.0
        %v682 = vmax.f32 %v635, 0.0
        %v683 = vmax.f32 %v673, 0.0
        %v684 = vmax.f32 %v638, 0.0
        %v685 = vmax.f32 %v676, 0.0
        %v686 = vmax.f32 %v640, 0.0
        %v687 = vmax.f32 %v678, 0.0
        %v688 = vpack.c.bf16 %v682, %v680
        %v689 = vpack.c.bf16 %v683, %v681
        %v690 = vpack.c.bf16 %v686, %v684
        %v691 = vpack.c.bf16 %v687, %v685
        %v692 = vld [vmem:[#allocation4] sm:$0xf]
        %v693 = vld [vmem:[#allocation4 + $0x4] sm:$0xf]
        %v694 = vld [vmem:[#allocation4 + $0x8] sm:$0xf]
        %v695 = vld [vmem:[#allocation4 + $0xc] sm:$0xf]
        %v696 = vld [vmem:[#allocation4 + $0x10] sm:$0xf]
        %v697 = vld [vmem:[#allocation4 + $0x14] sm:$0xf]
        %v698 = vld [vmem:[#allocation4 + $0x18] sm:$0xf]
        %v699 = vld [vmem:[#allocation4 + $0x1c] sm:$0xf]
        %v700 = vld [vmem:[#allocation4 + $0x20] sm:$0xf]
        %v701 = vld [vmem:[#allocation4 + $0x24] sm:$0xf]
        %v702 = vld [vmem:[#allocation4 + $0x28] sm:$0xf]
        %v703 = vld [vmem:[#allocation4 + $0x2c] sm:$0xf]
        %v704 = vld [vmem:[#allocation4 + $0x30] sm:$0xf]
        %v705 = vld [vmem:[#allocation4 + $0x34] sm:$0xf]
        %v706 = vld [vmem:[#allocation4 + $0x38] sm:$0xf]
        %v707 = vld [vmem:[#allocation4 + $0x3c] sm:$0xf]
        %v708 = vld [vmem:[#allocation4 + $0x40] sm:$0xf]
        %v709 = vld [vmem:[#allocation4 + $0x44] sm:$0xf]
        %v710 = vld [vmem:[#allocation4 + $0x48] sm:$0xf]
        %v711 = vld [vmem:[#allocation4 + $0x4c] sm:$0xf]
        %v712 = vld [vmem:[#allocation4 + $0x50] sm:$0xf]
        %v713 = vld [vmem:[#allocation4 + $0x54] sm:$0xf]
        %v714 = vld [vmem:[#allocation4 + $0x58] sm:$0xf]
        %v715 = vld [vmem:[#allocation4 + $0x5c] sm:$0xf]
        %v716 = vld [vmem:[#allocation4 + $0x60] sm:$0xf]
        %v717 = vld [vmem:[#allocation4 + $0x64] sm:$0xf]
        %v718 = vld [vmem:[#allocation4 + $0x68] sm:$0xf]
        %v719 = vld [vmem:[#allocation4 + $0x6c] sm:$0xf]
        %v720 = vld [vmem:[#allocation4 + $0x70] sm:$0xf]
        %v721 = vld [vmem:[#allocation4 + $0x74] sm:$0xf]
        %v722 = vld [vmem:[#allocation4 + $0x78] sm:$0xf]
        %v723 = vld [vmem:[#allocation4 + $0x7c] sm:$0xf]
        %v724 = vld [vmem:[%s6] sm:$0x1]
        %v726 = vperm.slane %v724, 0
        %v760 = vunpack.c.l.b16 %v692
        %v761 = vunpack.c.l.b16 %v693
        %v762 = vunpack.c.l.b16 %v694
        %v763 = vunpack.c.l.b16 %v695
        %v764 = vunpack.c.l.b16 %v696
        %v765 = vunpack.c.l.b16 %v697
        %v766 = vunpack.c.l.b16 %v698
        %v767 = vunpack.c.l.b16 %v699
        %v768 = vunpack.c.l.b16 %v700
        %v769 = vunpack.c.l.b16 %v701
        %v770 = vunpack.c.l.b16 %v702
        %v771 = vunpack.c.l.b16 %v703
        %v772 = vunpack.c.l.b16 %v704
        %v773 = vunpack.c.l.b16 %v705
        %v774 = vunpack.c.l.b16 %v706
        %v775 = vunpack.c.l.b16 %v707
        %v776 = vunpack.c.l.b16 %v708
        %v777 = vunpack.c.l.b16 %v709
        %v778 = vunpack.c.l.b16 %v710
        %v779 = vunpack.c.l.b16 %v711
        %v780 = vunpack.c.l.b16 %v712
        %v781 = vunpack.c.l.b16 %v713
        %v782 = vunpack.c.l.b16 %v714
        %v783 = vunpack.c.l.b16 %v715
        %v784 = vunpack.c.l.b16 %v716
        %v785 = vunpack.c.l.b16 %v717
        %v786 = vunpack.c.l.b16 %v718
        %v787 = vunpack.c.l.b16 %v719
        %v788 = vunpack.c.l.b16 %v720
        %v789 = vunpack.c.l.b16 %v721
        %v790 = vunpack.c.l.b16 %v722
        %v791 = vunpack.c.l.b16 %v723
        %v792 = vpack.c.b16 %v761, %v760
        %v793 = vpack.c.b16 %v763, %v762
        %v794 = vpack.c.b16 %v765, %v764
        %v795 = vpack.c.b16 %v767, %v766
        %v796 = vpack.c.b16 %v769, %v768
        %v797 = vpack.c.b16 %v771, %v770
        %v798 = vpack.c.b16 %v773, %v772
        %v799 = vpack.c.b16 %v775, %v774
        %v800 = vpack.c.b16 %v777, %v776
        %v801 = vpack.c.b16 %v779, %v778
        %v802 = vpack.c.b16 %v781, %v780
        %v803 = vpack.c.b16 %v783, %v782
        %v804 = vpack.c.b16 %v785, %v784
        %v805 = vpack.c.b16 %v787, %v786
        %v806 = vpack.c.b16 %v789, %v788
        %v807 = vpack.c.b16 %v791, %v790
        %824 = vmatpush.bf16.msra.mxu0 %v799
        %825 = vmatpush.bf16.msra.mxu0 %v798
        %826 = vmatpush.bf16.msra.mxu0 %v797
        %827 = vmatpush.bf16.msra.mxu0 %v796
        %828 = vmatpush.bf16.msra.mxu0 %v795
        %829 = vmatpush.bf16.msra.mxu0 %v794
        %830 = vmatpush.bf16.msra.mxu0 %v793
        %831 = vmatpush.bf16.msra.mxu0 %v792
        %832 = vmatmul.bf16.gmra.mxu0 %v688
        %v833 = vpop.f32.mrf.mxu0
        %v834 = vadd.f32 %v726, %v833
        %v835 = vpop.f32.mrf.mxu0
        %v836 = vadd.f32 %v726, %v835
        %837 = vmatmul.bf16.gmra.mxu0 %v690
        %v838 = vpop.f32.mrf.mxu0
        %v839 = vadd.f32 %v726, %v838
        %v840 = vpop.f32.mrf.mxu0
        %v841 = vadd.f32 %v726, %v840
        %842 = vdwg.mxu0
        %843 = vmatpush.bf16.msra.mxu0 %v807
        %844 = vmatpush.bf16.msra.mxu0 %v806
        %845 = vmatpush.bf16.msra.mxu0 %v805
        %846 = vmatpush.bf16.msra.mxu0 %v804
        %847 = vmatpush.bf16.msra.mxu0 %v803
        %848 = vmatpush.bf16.msra.mxu0 %v802
        %849 = vmatpush.bf16.msra.mxu0 %v801
        %850 = vmatpush.bf16.msra.mxu0 %v800
        %851 = vmatmul.bf16.gmra.mxu0 %v689
        %v852 = vpop.f32.mrf.mxu0
        %v853 = vadd.f32 %v834, %v852
        %v854 = vpop.f32.mrf.mxu0
        %v855 = vadd.f32 %v836, %v854
        %856 = vmatmul.bf16.gmra.mxu0 %v691
        %v857 = vpop.f32.mrf.mxu0
        %v858 = vadd.f32 %v839, %v857
        %v859 = vpop.f32.mrf.mxu0
        %v860 = vadd.f32 %v841, %v859
        %861 = vdwg.mxu0
        %v862 = vpack.c.bf16 %v853, %v853
        %v863 = vpack.c.bf16 %v855, %v855
        %v864 = vpack.c.bf16 %v858, %v858
        %v865 = vpack.c.bf16 %v860, %v860
        %866 = vst [vmem:[%s314] sm:$0xf] %v862
        %867 = vst [vmem:[%s314 + $0x4] sm:$0xf] %v863
        %868 = vst [vmem:[%s314 + $0x8] sm:$0xf] %v864
        %869 = vst [vmem:[%s314 + $0xc] sm:$0xf] %v865
        %s870 = smul.u32 4, %s20
        %p871 = scmp.lt.s32.totalorder %s870, 7
        %s872 = scalar_select %p871, %s870, 7
        %s873 = smul.addr %s872, 4
        %s874 = scalar_lea.vmem %s7, %s873
        // Predicated region
        $region57: #{dqn_forward.1} parent=47 // pred_check
          %p875 = pneg %p190
        $region58: #{dqn_forward.1} parent=47 // pred_check_branch
          %877 = sbr.rel (%p875) target = $region60
        $region59: #{dqn_forward.1} parent=47 // pred_region
          %s878 = smul.u32 4, %s20
        $region60: #{dqn_forward.1} parent=47 // pred_fallthru
          _
      $region48: #{dqn_forward.1} parent=5 // pred_fallthru
        _
      %p879 = scmp.le.s32.totalorder 2, %s15
      // Predicated region
      $region61: #{dqn_forward.1} parent=5 // pred_check
        %p880 = pneg %p879
      $region62: #{dqn_forward.1} parent=5 // pred_check_branch
        %882 = sbr.rel (%p880) target = $region64
      $region63: #{dqn_forward.1} parent=5 // pred_region
        %s883 = ssub.s32 %s15, 2
        // Predicated region
        $region65: #{dqn_forward.1} parent=63 // pred_check
          %p884 = pneg %p196
        $region66: #{dqn_forward.1} parent=63 // pred_check_branch
          %886 = sbr.rel (%p884) target = $region68
        $region67: #{dqn_forward.1} parent=63 // pred_region
          %s887 = smul.u32 4, %s21
          %p888 = scmp.lt.s32.totalorder %s887, 7
          %s889 = scalar_select %p888, %s887, 7
          %s890 = smul.addr %s889, 4
          %s891 = scalar_lea.vmem %s7, %s890
        $region68: #{dqn_forward.1} parent=63 // pred_fallthru
          _
      $region64: #{dqn_forward.1} parent=5 // pred_fallthru
        _
    $region6: #{dqn_forward.1} parent=1 // loop_footer
      %s19 = sadd.s32 1, %s15
    $region7: #{dqn_forward.1} parent=1 // loop_footer_branch
      %14 = sbr.rel target = $region3
    $region8: #{dqn_forward.1} parent=1 // loop_exit
      _
    %892 = vsyncpa [#allocation3], 1
    %s893 = scalar_lea.sflag [#allocation3], 1
    %894 = vsyncpa %s893, 1
    %895 = vsyncpa [#allocation5], 1

</llo_original>
